<compile_context>
chip_gen: v5e
topology: v5e:2x2
jax: 0.10.0
libtpu: 0.0.40
codegen_flags: <defaults>
</compile_context>

<pallas_src>
import jax
import jax.numpy as jnp
from jax.experimental import pallas as pl
from jax.experimental.pallas import tpu as pltpu


# ---------------------------------------------------------------------------
# Pallas kernel: full coupling-layer forward for one batch tile (batch on lanes).
# ---------------------------------------------------------------------------
def coupling_kernel(xT_ref, lpT_ref, w1_ref, b1_ref, w2_ref, b2_ref, w3_ref, b3_ref,
                    yT_ref, dlpT_ref):
    xT = xT_ref[...]                                    # (D, TB) f32, batch on lanes
    cdt = w1_ref.dtype                                  # matmul operand dtype (bf16 or f32)
    H = w2_ref.shape[0] // 2
    D = w3_ref.shape[0] // 2

    # layer 1 (both nets stacked, mask folded into columns): (2H, D) @ (D, TB)
    z = jnp.dot(w1_ref[...], xT.astype(cdt),
                preferred_element_type=jnp.float32) + b1_ref[...]
    a1 = jnp.concatenate([jnp.tanh(z[:H, :]), jnp.maximum(z[H:, :], 0.0)], axis=0)

    # layer 2 (block-diagonal): (2H, 2H) @ (2H, TB)
    z = jnp.dot(w2_ref[...], a1.astype(cdt),
                preferred_element_type=jnp.float32) + b2_ref[...]
    a2 = jnp.concatenate([jnp.tanh(z[:H, :]), jnp.maximum(z[H:, :], 0.0)], axis=0)

    # layer 3 (block-diagonal, (1-mask) folded into rows): (2D, 2H) @ (2H, TB)
    out = jnp.dot(w3_ref[...], a2.astype(cdt),
                  preferred_element_type=jnp.float32) + b3_ref[...]
    s_pre = out[:D, :]                                  # log(masked_scale); masked rows exactly 0
    shift_m = out[D:, :]                                # masked shift

    yT_ref[...] = xT * jnp.exp(s_pre) + shift_m                               # affine update
    dlpT_ref[...] = lpT_ref[...] - jnp.sum(s_pre, axis=0, keepdims=True)      # logpx - logdet


# ---------------------------------------------------------------------------
# Wrapper helpers.
# ---------------------------------------------------------------------------
def _block_diag(a, b):
    z_ab = jnp.zeros((a.shape[0], b.shape[1]), a.dtype)
    z_ba = jnp.zeros((b.shape[0], a.shape[1]), b.dtype)
    top = jnp.concatenate([a, z_ab], axis=1)
    bot = jnp.concatenate([z_ba, b], axis=1)
    return jnp.concatenate([top, bot], axis=0)


def _pick_batch_tile(B):
    """Return (padded_B, tile): lane-aligned, >=2 grid steps when B >= 256 (v7x megacore,
    >=2 pipeline stages), tile as large as possible (amortise ~0.35us/step overhead),
    capped at 8192 columns so VMEM stays well under the v5e 16 MiB scoped default."""
    if B < 256:
        return B, B                        # tiny batch: single full-extent tile
    B_pad = ((B + 255) // 256) * 256       # lane align + guarantee >=2 grid steps
    for t in (8192, 4096, 2048, 1024, 512, 256, 128):
        if B_pad % t == 0 and B_pad // t >= 2:
            return B_pad, t
    return B_pad, 128                      # unreachable: B_pad is a multiple of 256


# ---------------------------------------------------------------------------
# Feature-major core: xT (D, B), lpT (1, B) -> (yT, logpx + delta_logp) in the
# same layout, so a stack of coupling layers chains without re-transposing.
# ---------------------------------------------------------------------------
def masked_coupling_forward_fm(xT, lpT, mask, params, *, batch_tile=None, use_bf16=True):
    # TODO(synk): only the reverse=False branch of the PyTorch forward is implemented.
    D, B = xT.shape
    (sw1, sb1, sw2, sb2, sw3, sb3,
     tw1, tb1, tw2, tb2, tw3, tb3) = params
    H = sw1.shape[0]

    # NOTE: mask folding (and the log-free logdet) is only valid for a binary 0/1 mask.
    mask = mask.reshape(1, D).astype(jnp.float32)
    om_col = (1.0 - mask).reshape(D, 1)

    wdt = jnp.bfloat16 if use_bf16 else jnp.float32
    w1f = jnp.concatenate([sw1 * mask, tw1 * mask], axis=0).astype(wdt)   # (2H, D)
    b1f = jnp.concatenate([sb1, tb1], axis=0).reshape(2 * H, 1)           # (2H, 1) f32
    w2f = _block_diag(sw2, tw2).astype(wdt)                               # (2H, 2H)
    b2f = jnp.concatenate([sb2, tb2], axis=0).reshape(2 * H, 1)           # (2H, 1) f32
    w3f = _block_diag(sw3 * om_col, tw3 * om_col).astype(wdt)             # (2D, 2H)
    b3f = jnp.concatenate([sb3.reshape(D, 1) * om_col,
                           tb3.reshape(D, 1) * om_col], axis=0)           # (2D, 1) f32

    if batch_tile is None:
        B_pad, batch_tile = _pick_batch_tile(B)
    else:
        assert B % batch_tile == 0
        B_pad = B
    assert batch_tile == B_pad or batch_tile % 128 == 0, "batch tile must be lane aligned"
    if B_pad != B:
        pad = B_pad - B
        xT = jnp.pad(xT, ((0, 0), (0, pad)))
        lpT = jnp.pad(lpT, ((0, 0), (0, pad)))
    grid = (B_pad // batch_tile,)

    full = lambda a: pl.BlockSpec(a.shape, lambda i: (0,) * a.ndim)
    in_specs = [
        pl.BlockSpec((D, batch_tile), lambda i: (0, i)),   # x^T
        pl.BlockSpec((1, batch_tile), lambda i: (0, i)),   # logpx^T
        full(w1f), full(b1f), full(w2f), full(b2f), full(w3f), full(b3f),
    ]
    out_specs = [
        pl.BlockSpec((D, batch_tile), lambda i: (0, i)),   # y^T
        pl.BlockSpec((1, batch_tile), lambda i: (0, i)),   # (logpx + delta_logp)^T
    ]
    out_shape = [
        jax.ShapeDtypeStruct((D, B_pad), jnp.float32),
        jax.ShapeDtypeStruct((1, B_pad), jnp.float32),
    ]

    yT, dlpT = pl.pallas_call(
        coupling_kernel,
        out_shape=out_shape,
        grid_spec=pltpu.PrefetchScalarGridSpec(
            num_scalar_prefetch=0,
            grid=grid,
            in_specs=in_specs,
            out_specs=out_specs,
        ),
        compiler_params=pltpu.CompilerParams(
            dimension_semantics=("parallel",)),
    )(xT, lpT, w1f, b1f, w2f, b2f, w3f, b3f)

    if B_pad != B:
        yT = yT[:, :B]
        dlpT = dlpT[:, :B]
    return yT, dlpT


# ---------------------------------------------------------------------------
# Batch-major (module-compatible) interface: x (B, D), logpx (B, 1).
# Transposes only at the model boundary; for stacks of coupling layers call
# masked_coupling_forward_fm directly and amortise the transposes.
# ---------------------------------------------------------------------------
def masked_coupling_forward(x, logpx, mask, params, *, batch_tile=None, use_bf16=True):
    yT, dlpT = masked_coupling_forward_fm(x.T, logpx.T, mask, params,
                                          batch_tile=batch_tile, use_bf16=use_bf16)
    return yT.T, dlpT.T


# ---------------------------------------------------------------------------
# Deterministic parameter init (PyTorch nn.Linear default: U(-1/sqrt(fan_in), +)).
# Weights in PyTorch layout: (out_dim, in_dim), biases (out_dim,).
# ---------------------------------------------------------------------------
def init_linear(key, in_dim, out_dim):
    kw, kb = jax.random.split(key)
    bound = 1.0 / jnp.sqrt(in_dim)
    w = jax.random.uniform(kw, (out_dim, in_dim), jnp.float32, -bound, bound)
    b = jax.random.uniform(kb, (out_dim,), jnp.float32, -bound, bound)
    return w, b


def build_net_params(key, d, hidden_dims):
    dims = (d,) + tuple(hidden_dims) + (d,)
    keys = jax.random.split(key, len(dims) - 1)
    params = []
    for k, (i, o) in zip(keys, zip(dims[:-1], dims[1:])):
        params.extend(init_linear(k, i, o))
    return params


def sample_mask(d, mask_type="alternate", swap=False):
    mask = jnp.zeros((d,), jnp.float32)
    if mask_type == "alternate":
        mask = mask.at[::2].set(1.0)
    elif mask_type == "channel":
        mask = mask.at[: d // 2].set(1.0)
    else:
        raise ValueError(f"Unknown mask_type {mask_type}")
    if swap:
        mask = 1.0 - mask
    return mask.reshape(1, d)


# ---------------------------------------------------------------------------
# Pure-JAX reference (mirrors the PyTorch forward, reverse=False).
# ---------------------------------------------------------------------------
def reference_forward(x, logpx, mask, params):
    (sw1, sb1, sw2, sb2, sw3, sb3,
     tw1, tb1, tw2, tb2, tw3, tb3) = params
    xm = x * mask
    h = jnp.tanh(xm @ sw1.T + sb1)
    h = jnp.tanh(h @ sw2.T + sb2)
    scale = jnp.exp(h @ sw3.T + sb3)
    g = jnp.maximum(xm @ tw1.T + tb1, 0.0)
    g = jnp.maximum(g @ tw2.T + tb2, 0.0)
    shift = g @ tw3.T + tb3
    masked_scale = scale * (1.0 - mask) + mask
    masked_shift = shift * (1.0 - mask)
    logdet = jnp.sum(jnp.log(masked_scale), axis=1, keepdims=True)
    y = x * masked_scale + masked_shift
    return y, logpx - logdet


if __name__ == "__main__":
    d = 8
    hidden_dims = (32, 32)
    B = 256                      # small demo batch; auto-tile -> 128 columns, 2 grid steps

    key = jax.random.PRNGKey(0)
    k_x, k_lp, k_scale, k_shift = jax.random.split(key, 4)

    x = jax.random.normal(k_x, (B, d), jnp.float32)
    logpx = jax.random.normal(k_lp, (B, 1), jnp.float32)
    mask = sample_mask(d, mask_type="alternate", swap=False)

    scale_params = build_net_params(k_scale, d, hidden_dims)
    shift_params = build_net_params(k_shift, d, hidden_dims)
    params = tuple(scale_params + shift_params)

    y_ref, lp_ref = reference_forward(x, logpx, mask, params)

    # f32-operand kernel: numerically equivalent to the reference.
    y32, lp32 = masked_coupling_forward(x, logpx, mask, params, use_bf16=False)
    jax.block_until_ready((y32, lp32))
    assert jnp.allclose(y32, y_ref, atol=2e-4, rtol=2e-4)
    assert jnp.allclose(lp32, lp_ref, atol=2e-4, rtol=2e-4)

    # bf16-operand kernel (perf default): tolerance loosened per bf16 mantissa (8 bits).
    y16, lp16 = masked_coupling_forward(x, logpx, mask, params, use_bf16=True)
    jax.block_until_ready((y16, lp16))
    assert jnp.allclose(y16, y_ref, atol=1.5e-1, rtol=5e-2)
    assert jnp.allclose(lp16, lp_ref, atol=2e-1, rtol=5e-2)

    print("KERNEL_OK")
</pallas_src>

<mosaic_0001>
module attributes {stable_mosaic.version = 11 : i64} {
  func.func @coupling_kernel(%arg0: i32, %arg1: memref<8x128xf32, #tpu.memory_space<vmem>>, %arg2: memref<1x128xf32, #tpu.memory_space<vmem>>, %arg3: memref<64x8xf32, #tpu.memory_space<vmem>>, %arg4: memref<64x1xf32, #tpu.memory_space<vmem>>, %arg5: memref<64x64xf32, #tpu.memory_space<vmem>>, %arg6: memref<64x1xf32, #tpu.memory_space<vmem>>, %arg7: memref<16x64xf32, #tpu.memory_space<vmem>>, %arg8: memref<16x1xf32, #tpu.memory_space<vmem>>, %arg9: memref<8x128xf32, #tpu.memory_space<vmem>>, %arg10: memref<1x128xf32, #tpu.memory_space<vmem>>) attributes {dimension_semantics = [#tpu.dimension_semantics<parallel>], iteration_bounds = array<i64: 2>, scalar_prefetch = 0 : i64, scratch_operands = 0 : i64, tpu.core_type = #tpu.core_type<tc>, window_params = [{transform_indices = @transform_0, window_bounds = array<i64: 8, 128>}, {transform_indices = @transform_1, window_bounds = array<i64: 1, 128>}, {pipeline_mode = #tpu.pipeline_mode<synchronous>, transform_indices = @transform_2, window_bounds = array<i64: 64, 8>}, {pipeline_mode = #tpu.pipeline_mode<synchronous>, transform_indices = @transform_3, window_bounds = array<i64: 64, 1>}, {pipeline_mode = #tpu.pipeline_mode<synchronous>, transform_indices = @transform_4, window_bounds = array<i64: 64, 64>}, {pipeline_mode = #tpu.pipeline_mode<synchronous>, transform_indices = @transform_5, window_bounds = array<i64: 64, 1>}, {pipeline_mode = #tpu.pipeline_mode<synchronous>, transform_indices = @transform_6, window_bounds = array<i64: 16, 64>}, {pipeline_mode = #tpu.pipeline_mode<synchronous>, transform_indices = @transform_7, window_bounds = array<i64: 16, 1>}, {transform_indices = @transform_8, window_bounds = array<i64: 8, 128>}, {transform_indices = @transform_9, window_bounds = array<i64: 1, 128>}]} {
    %c0 = arith.constant 0 : index
    %c0_0 = arith.constant 0 : index
    %0 = vector.load %arg1[%c0, %c0_0] : memref<8x128xf32, #tpu.memory_space<vmem>>, vector<8x128xf32>
    %c0_1 = arith.constant 0 : index
    %c0_2 = arith.constant 0 : index
    %1 = vector.load %arg3[%c0_1, %c0_2] : memref<64x8xf32, #tpu.memory_space<vmem>>, vector<64x8xf32>
    %cst = arith.constant dense<0.000000e+00> : vector<64x128xf32>
    %2 = tpu.matmul %1, %0, %cst {dimension_numbers = #tpu.dot_dimension_numbers<[1], [0], [0], [1], [0, 0, 1, 1], [], []>} : vector<64x8xf32>, vector<8x128xf32>, vector<64x128xf32> -> vector<64x128xf32>
    %c0_3 = arith.constant 0 : index
    %c0_4 = arith.constant 0 : index
    %3 = vector.load %arg4[%c0_3, %c0_4] : memref<64x1xf32, #tpu.memory_space<vmem>>, vector<64x1xf32>
    %4 = vector.broadcast %3 : vector<64x1xf32> to vector<64x128xf32>
    %5 = arith.addf %2, %4 : vector<64x128xf32>
    %6 = vector.extract_strided_slice %5 {offsets = [0, 0], sizes = [32, 128], strides = [1, 1]} : vector<64x128xf32> to vector<32x128xf32>
    %7 = math.tanh %6 : vector<32x128xf32>
    %8 = vector.extract_strided_slice %5 {offsets = [32, 0], sizes = [32, 128], strides = [1, 1]} : vector<64x128xf32> to vector<32x128xf32>
    %cst_5 = arith.constant 0.000000e+00 : f32
    %9 = vector.broadcast %cst_5 : f32 to vector<32x128xf32>
    %10 = arith.maximumf %8, %9 : vector<32x128xf32>
    %11 = tpu.concatenate %7, %10 in 0 : vector<32x128xf32>, vector<32x128xf32> -> vector<64x128xf32>
    %c0_6 = arith.constant 0 : index
    %c0_7 = arith.constant 0 : index
    %12 = vector.load %arg5[%c0_6, %c0_7] : memref<64x64xf32, #tpu.memory_space<vmem>>, vector<64x64xf32>
    %cst_8 = arith.constant dense<0.000000e+00> : vector<64x128xf32>
    %13 = tpu.matmul %12, %11, %cst_8 {dimension_numbers = #tpu.dot_dimension_numbers<[1], [0], [0], [1], [0, 0, 1, 1], [], []>} : vector<64x64xf32>, vector<64x128xf32>, vector<64x128xf32> -> vector<64x128xf32>
    %c0_9 = arith.constant 0 : index
    %c0_10 = arith.constant 0 : index
    %14 = vector.load %arg6[%c0_9, %c0_10] : memref<64x1xf32, #tpu.memory_space<vmem>>, vector<64x1xf32>
    %15 = vector.broadcast %14 : vector<64x1xf32> to vector<64x128xf32>
    %16 = arith.addf %13, %15 : vector<64x128xf32>
    %17 = vector.extract_strided_slice %16 {offsets = [0, 0], sizes = [32, 128], strides = [1, 1]} : vector<64x128xf32> to vector<32x128xf32>
    %18 = math.tanh %17 : vector<32x128xf32>
    %19 = vector.extract_strided_slice %16 {offsets = [32, 0], sizes = [32, 128], strides = [1, 1]} : vector<64x128xf32> to vector<32x128xf32>
    %cst_11 = arith.constant 0.000000e+00 : f32
    %20 = vector.broadcast %cst_11 : f32 to vector<32x128xf32>
    %21 = arith.maximumf %19, %20 : vector<32x128xf32>
    %22 = tpu.concatenate %18, %21 in 0 : vector<32x128xf32>, vector<32x128xf32> -> vector<64x128xf32>
    %c0_12 = arith.constant 0 : index
    %c0_13 = arith.constant 0 : index
    %23 = vector.load %arg7[%c0_12, %c0_13] : memref<16x64xf32, #tpu.memory_space<vmem>>, vector<16x64xf32>
    %cst_14 = arith.constant dense<0.000000e+00> : vector<16x128xf32>
    %24 = tpu.matmul %23, %22, %cst_14 {dimension_numbers = #tpu.dot_dimension_numbers<[1], [0], [0], [1], [0, 0, 1, 1], [], []>} : vector<16x64xf32>, vector<64x128xf32>, vector<16x128xf32> -> vector<16x128xf32>
    %c0_15 = arith.constant 0 : index
    %c0_16 = arith.constant 0 : index
    %25 = vector.load %arg8[%c0_15, %c0_16] : memref<16x1xf32, #tpu.memory_space<vmem>>, vector<16x1xf32>
    %26 = vector.broadcast %25 : vector<16x1xf32> to vector<16x128xf32>
    %27 = arith.addf %24, %26 : vector<16x128xf32>
    %28 = vector.extract_strided_slice %27 {offsets = [0, 0], sizes = [8, 128], strides = [1, 1]} : vector<16x128xf32> to vector<8x128xf32>
    %29 = vector.extract_strided_slice %27 {offsets = [8, 0], sizes = [8, 128], strides = [1, 1]} : vector<16x128xf32> to vector<8x128xf32>
    %30 = math.exp %28 : vector<8x128xf32>
    %31 = arith.mulf %0, %30 : vector<8x128xf32>
    %32 = arith.addf %31, %29 : vector<8x128xf32>
    %c0_17 = arith.constant 0 : index
    %c0_18 = arith.constant 0 : index
    %33 = vector.load %arg9[%c0_17, %c0_18] : memref<8x128xf32, #tpu.memory_space<vmem>>, vector<8x128xf32>
    tpu.vector_store %arg9[%c0_17, %c0_18], %32 {strides = array<i32>} : memref<8x128xf32, #tpu.memory_space<vmem>>, vector<8x128xf32>,
    %c0_19 = arith.constant 0 : index
    %c0_20 = arith.constant 0 : index
    %34 = vector.load %arg2[%c0_19, %c0_20] : memref<1x128xf32, #tpu.memory_space<vmem>>, vector<1x128xf32>
    %cst_21 = arith.constant dense<0.000000e+00> : vector<128xf32>
    %35 = vector.multi_reduction <add>, %28, %cst_21 [0] : vector<8x128xf32> to vector<128xf32>
    %36 = vector.shape_cast %35 : vector<128xf32> to vector<1x128xf32>
    %37 = arith.subf %34, %36 : vector<1x128xf32>
    %c0_22 = arith.constant 0 : index
    %c0_23 = arith.constant 0 : index
    %38 = vector.load %arg10[%c0_22, %c0_23] : memref<1x128xf32, #tpu.memory_space<vmem>>, vector<1x128xf32>
    tpu.vector_store %arg10[%c0_22, %c0_23], %37 {strides = array<i32>} : memref<1x128xf32, #tpu.memory_space<vmem>>, vector<1x128xf32>,
    return
  }
  func.func @transform_0(%arg0: i32) -> (i32, i32) {
    %c0_i32 = arith.constant 0 : i32
    %c0_i32_0 = arith.constant 0 : i32
    return %c0_i32, %arg0 : i32, i32
  }
  func.func @transform_1(%arg0: i32) -> (i32, i32) {
    %c0_i32 = arith.constant 0 : i32
    %c0_i32_0 = arith.constant 0 : i32
    return %c0_i32, %arg0 : i32, i32
  }
  func.func @transform_2(%arg0: i32) -> (i32, i32) {
    %c0_i32 = arith.constant 0 : i32
    %c0_i32_0 = arith.constant 0 : i32
    %c0_i32_1 = arith.constant 0 : i32
    return %c0_i32, %c0_i32_0 : i32, i32
  }
  func.func @transform_3(%arg0: i32) -> (i32, i32) {
    %c0_i32 = arith.constant 0 : i32
    %c0_i32_0 = arith.constant 0 : i32
    %c0_i32_1 = arith.constant 0 : i32
    return %c0_i32, %c0_i32_0 : i32, i32
  }
  func.func @transform_4(%arg0: i32) -> (i32, i32) {
    %c0_i32 = arith.constant 0 : i32
    %c0_i32_0 = arith.constant 0 : i32
    %c0_i32_1 = arith.constant 0 : i32
    return %c0_i32, %c0_i32_0 : i32, i32
  }
  func.func @transform_5(%arg0: i32) -> (i32, i32) {
    %c0_i32 = arith.constant 0 : i32
    %c0_i32_0 = arith.constant 0 : i32
    %c0_i32_1 = arith.constant 0 : i32
    return %c0_i32, %c0_i32_0 : i32, i32
  }
  func.func @transform_6(%arg0: i32) -> (i32, i32) {
    %c0_i32 = arith.constant 0 : i32
    %c0_i32_0 = arith.constant 0 : i32
    %c0_i32_1 = arith.constant 0 : i32
    return %c0_i32, %c0_i32_0 : i32, i32
  }
  func.func @transform_7(%arg0: i32) -> (i32, i32) {
    %c0_i32 = arith.constant 0 : i32
    %c0_i32_0 = arith.constant 0 : i32
    %c0_i32_1 = arith.constant 0 : i32
    return %c0_i32, %c0_i32_0 : i32, i32
  }
  func.func @transform_8(%arg0: i32) -> (i32, i32) {
    %c0_i32 = arith.constant 0 : i32
    %c0_i32_0 = arith.constant 0 : i32
    return %c0_i32, %arg0 : i32, i32
  }
  func.func @transform_9(%arg0: i32) -> (i32, i32) {
    %c0_i32 = arith.constant 0 : i32
    %c0_i32_0 = arith.constant 0 : i32
    return %c0_i32, %arg0 : i32, i32
  }
}

</mosaic_0001>

<llo_original>
// kernel: tpu_custom_call.1
$region0: #{tpu_custom_call.1}
  #allocation0 [shape = 'u32[]', space=smem, size = 0x4, offset = 0x4, fixed_abs, tag = 'smem constant byte address 0x4 - core index']
  #allocation1 [shape = 'u32[72,128]{1,0:T(1,128)}', space=vmem, size = 0x9000, scoped, tag = 'internal scratch']
  %s0 = inlined_call_operand.vmem [shape: f32[8,256], index: 0, kind: input, shape index: {}]
  %s1 = inlined_call_operand.vmem [shape: f32[1,256], index: 1, kind: input, shape index: {}]
  %s2 = inlined_call_operand.vmem [shape: f32[64,8], index: 2, kind: input, shape index: {}]
  %s3 = inlined_call_operand.vmem [shape: f32[64,1], index: 3, kind: input, shape index: {}]
  %s4 = inlined_call_operand.vmem [shape: f32[64,64], index: 4, kind: input, shape index: {}]
  %s5 = inlined_call_operand.vmem [shape: f32[64,1], index: 5, kind: input, shape index: {}]
  %s6 = inlined_call_operand.vmem [shape: f32[16,64], index: 6, kind: input, shape index: {}]
  %s7 = inlined_call_operand.vmem [shape: f32[16,1], index: 7, kind: input, shape index: {}]
  %s8 = inlined_call_operand.hbm [shape: f32[8,256], index: 8, kind: output, shape index: {0}]
  %s9 = inlined_call_operand.hbm [shape: f32[1,256], index: 9, kind: output, shape index: {1}]
  %10 = xla_tuple %s8, %s9
  %s11 = sld [smem:[#allocation0]]
  $region73: #{tpu_custom_call.1} parent=0
    _
  %s13 = ssub.s32 1, %s11
  %s14 = scalar_select 0, %s13, %s11
  $region1: #{tpu_custom_call.1} parent=0
    #allocation2 [shape = 'u8[8192]{0}', space=vmem, size = 0x2000, scoped, tag = 'output window, operand 0']
    #allocation3 [shape = 's32[2]{0}', space=sflag, size = 0x8, scoped, tag = 'scoped memory for tpu_custom_call.1']
    #allocation4 [shape = 'u8[1024]{0}', space=vmem, size = 0x400, scoped, tag = 'output window, operand 1']
    #allocation5 [shape = 's32[2]{0}', space=sflag, size = 0x8, scoped, tag = 'scoped memory for tpu_custom_call.1']
    %15 = vsyncpa [#allocation3], 0
    %s16 = scalar_lea.sflag [#allocation3], 1
    %17 = vsyncpa %s16, 0
    %18 = vsyncpa [#allocation5], 0
    %s19 = scalar_lea.sflag [#allocation5], 1
    %20 = vsyncpa %s19, 0
    loop: start=0, step=1, limit=4
    $region2: #{tpu_custom_call.1} parent=1 // loop_pre_header
      _
    $region3: #{tpu_custom_call.1} parent=1 // loop_header
      %s22 = sphi 0, %s26
      %p23 = scmp.ge.s32.totalorder %s22, 4
      %s32 = sphi 0, %s34
      %s35 = sphi 0, %s32
      %s36 = sphi 0, %s35
      %s52 = sphi 0, %s36
      %s58 = sphi 0, %s60
      %s61 = sphi 0, %s58
      %s62 = sphi 0, %s61
      %s78 = sphi 0, %s62
      %s82 = sphi 0, %s82
      %s84 = sphi 0, %s82
      %s85 = sphi 0, %s84
      %s99 = sphi 0, %s85
      %s103 = sphi 0, %s103
      %s105 = sphi 0, %s103
      %s106 = sphi 0, %s105
      %s120 = sphi 0, %s106
      %s124 = sphi 0, %s124
      %s126 = sphi 0, %s124
      %s127 = sphi 0, %s126
      %s141 = sphi 0, %s127
      %s145 = sphi 0, %s145
      %s147 = sphi 0, %s145
      %s148 = sphi 0, %s147
      %s162 = sphi 0, %s148
      %s166 = sphi 0, %s166
      %s168 = sphi 0, %s166
      %s169 = sphi 0, %s168
      %s183 = sphi 0, %s169
      %s187 = sphi 0, %s187
      %s189 = sphi 0, %s187
      %s190 = sphi 0, %s189
      %s204 = sphi 0, %s190
      %s210 = sphi 0, %s212
      %s213 = sphi 0, %s210
      %s214 = sphi 0, %s213
      %s230 = sphi 0, %s214
      %s236 = sphi 0, %s238
      %s239 = sphi 0, %s236
      %s240 = sphi 0, %s239
      %s256 = sphi 0, %s240
    $region4: #{tpu_custom_call.1} parent=1 // loop_header_branch
      %25 = sbr.rel (%p23) target = $region8
    $region5: #{tpu_custom_call.1} parent=1 // loop_body
      %s27 = ssub.s32 %s22, 1
      %s28 = ssub.s32 %s22, 2
      %s29 = sadd.s32 %s22, 1
      %s30 = ssub.s32 %s22, %s29
      %p31 = scmp.eq.s32.totalorder %s30, 0
      %s33 = sadd.s32 %s32, 1
      %s34 = scalar_select %p31, %s32, %s33
      %p37 = pneg %p31
      %p38 = scmp.eq.s32.totalorder %s22, 1
      %p39 = por %p37, %p38
      %p40 = scmp.ne.s32.totalorder %s32, %s35
      %p41 = scmp.eq.s32.totalorder %s22, 0
      %p42 = por %p40, %p41
      %p43 = scmp.ne.s32.totalorder %s32, %s35
      %p44 = scmp.eq.s32.totalorder %s27, 1
      %p45 = por %p43, %p44
      %p46 = scmp.ne.s32.totalorder %s35, %s36
      %p47 = scmp.eq.s32.totalorder %s27, 0
      %p48 = por %p46, %p47
      %p49 = scmp.ne.s32.totalorder %s35, %s36
      %p50 = scmp.eq.s32.totalorder %s28, 1
      %p51 = por %p49, %p50
      %p53 = scmp.ne.s32.totalorder %s36, %s52
      %p54 = scmp.eq.s32.totalorder %s28, 0
      %p55 = por %p53, %p54
      %s56 = ssub.s32 %s22, %s29
      %p57 = scmp.eq.s32.totalorder %s56, 0
      %s59 = sadd.s32 %s58, 1
      %s60 = scalar_select %p57, %s58, %s59
      %p63 = pneg %p57
      %p64 = scmp.eq.s32.totalorder %s22, 1
      %p65 = por %p63, %p64
      %p66 = scmp.ne.s32.totalorder %s58, %s61
      %p67 = scmp.eq.s32.totalorder %s22, 0
      %p68 = por %p66, %p67
      %p69 = scmp.ne.s32.totalorder %s58, %s61
      %p70 = scmp.eq.s32.totalorder %s27, 1
      %p71 = por %p69, %p70
      %p72 = scmp.ne.s32.totalorder %s61, %s62
      %p73 = scmp.eq.s32.totalorder %s27, 0
      %p74 = por %p72, %p73
      %p75 = scmp.ne.s32.totalorder %s61, %s62
      %p76 = scmp.eq.s32.totalorder %s28, 1
      %p77 = por %p75, %p76
      %p79 = scmp.ne.s32.totalorder %s62, %s78
      %p80 = scmp.eq.s32.totalorder %s28, 0
      %p81 = por %p79, %p80
      %s83 = sadd.s32 %s82, 1
      %p86 = scmp.eq.s32.totalorder %s22, 1
      %p87 = scmp.ne.s32.totalorder %s82, %s84
      %p88 = scmp.eq.s32.totalorder %s22, 0
      %p89 = por %p87, %p88
      %p90 = scmp.ne.s32.totalorder %s82, %s84
      %p91 = scmp.eq.s32.totalorder %s27, 1
      %p92 = por %p90, %p91
      %p93 = scmp.ne.s32.totalorder %s84, %s85
      %p94 = scmp.eq.s32.totalorder %s27, 0
      %p95 = por %p93, %p94
      %p96 = scmp.ne.s32.totalorder %s84, %s85
      %p97 = scmp.eq.s32.totalorder %s28, 1
      %p98 = por %p96, %p97
      %p100 = scmp.ne.s32.totalorder %s85, %s99
      %p101 = scmp.eq.s32.totalorder %s28, 0
      %p102 = por %p100, %p101
      %s104 = sadd.s32 %s103, 1
      %p107 = scmp.eq.s32.totalorder %s22, 1
      %p108 = scmp.ne.s32.totalorder %s103, %s105
      %p109 = scmp.eq.s32.totalorder %s22, 0
      %p110 = por %p108, %p109
      %p111 = scmp.ne.s32.totalorder %s103, %s105
      %p112 = scmp.eq.s32.totalorder %s27, 1
      %p113 = por %p111, %p112
      %p114 = scmp.ne.s32.totalorder %s105, %s106
      %p115 = scmp.eq.s32.totalorder %s27, 0
      %p116 = por %p114, %p115
      %p117 = scmp.ne.s32.totalorder %s105, %s106
      %p118 = scmp.eq.s32.totalorder %s28, 1
      %p119 = por %p117, %p118
      %p121 = scmp.ne.s32.totalorder %s106, %s120
      %p122 = scmp.eq.s32.totalorder %s28, 0
      %p123 = por %p121, %p122
      %s125 = sadd.s32 %s124, 1
      %p128 = scmp.eq.s32.totalorder %s22, 1
      %p129 = scmp.ne.s32.totalorder %s124, %s126
      %p130 = scmp.eq.s32.totalorder %s22, 0
      %p131 = por %p129, %p130
      %p132 = scmp.ne.s32.totalorder %s124, %s126
      %p133 = scmp.eq.s32.totalorder %s27, 1
      %p134 = por %p132, %p133
      %p135 = scmp.ne.s32.totalorder %s126, %s127
      %p136 = scmp.eq.s32.totalorder %s27, 0
      %p137 = por %p135, %p136
      %p138 = scmp.ne.s32.totalorder %s126, %s127
      %p139 = scmp.eq.s32.totalorder %s28, 1
      %p140 = por %p138, %p139
      %p142 = scmp.ne.s32.totalorder %s127, %s141
      %p143 = scmp.eq.s32.totalorder %s28, 0
      %p144 = por %p142, %p143
      %s146 = sadd.s32 %s145, 1
      %p149 = scmp.eq.s32.totalorder %s22, 1
      %p150 = scmp.ne.s32.totalorder %s145, %s147
      %p151 = scmp.eq.s32.totalorder %s22, 0
      %p152 = por %p150, %p151
      %p153 = scmp.ne.s32.totalorder %s145, %s147
      %p154 = scmp.eq.s32.totalorder %s27, 1
      %p155 = por %p153, %p154
      %p156 = scmp.ne.s32.totalorder %s147, %s148
      %p157 = scmp.eq.s32.totalorder %s27, 0
      %p158 = por %p156, %p157
      %p159 = scmp.ne.s32.totalorder %s147, %s148
      %p160 = scmp.eq.s32.totalorder %s28, 1
      %p161 = por %p159, %p160
      %p163 = scmp.ne.s32.totalorder %s148, %s162
      %p164 = scmp.eq.s32.totalorder %s28, 0
      %p165 = por %p163, %p164
      %s167 = sadd.s32 %s166, 1
      %p170 = scmp.eq.s32.totalorder %s22, 1
      %p171 = scmp.ne.s32.totalorder %s166, %s168
      %p172 = scmp.eq.s32.totalorder %s22, 0
      %p173 = por %p171, %p172
      %p174 = scmp.ne.s32.totalorder %s166, %s168
      %p175 = scmp.eq.s32.totalorder %s27, 1
      %p176 = por %p174, %p175
      %p177 = scmp.ne.s32.totalorder %s168, %s169
      %p178 = scmp.eq.s32.totalorder %s27, 0
      %p179 = por %p177, %p178
      %p180 = scmp.ne.s32.totalorder %s168, %s169
      %p181 = scmp.eq.s32.totalorder %s28, 1
      %p182 = por %p180, %p181
      %p184 = scmp.ne.s32.totalorder %s169, %s183
      %p185 = scmp.eq.s32.totalorder %s28, 0
      %p186 = por %p184, %p185
      %s188 = sadd.s32 %s187, 1
      %p191 = scmp.eq.s32.totalorder %s22, 1
      %p192 = scmp.ne.s32.totalorder %s187, %s189
      %p193 = scmp.eq.s32.totalorder %s22, 0
      %p194 = por %p192, %p193
      %p195 = scmp.ne.s32.totalorder %s187, %s189
      %p196 = scmp.eq.s32.totalorder %s27, 1
      %p197 = por %p195, %p196
      %p198 = scmp.ne.s32.totalorder %s189, %s190
      %p199 = scmp.eq.s32.totalorder %s27, 0
      %p200 = por %p198, %p199
      %p201 = scmp.ne.s32.totalorder %s189, %s190
      %p202 = scmp.eq.s32.totalorder %s28, 1
      %p203 = por %p201, %p202
      %p205 = scmp.ne.s32.totalorder %s190, %s204
      %p206 = scmp.eq.s32.totalorder %s28, 0
      %p207 = por %p205, %p206
      %s208 = ssub.s32 %s22, %s29
      %p209 = scmp.eq.s32.totalorder %s208, 0
      %s211 = sadd.s32 %s210, 1
      %s212 = scalar_select %p209, %s210, %s211
      %p215 = pneg %p209
      %p216 = scmp.eq.s32.totalorder %s22, 1
      %p217 = por %p215, %p216
      %p218 = scmp.ne.s32.totalorder %s210, %s213
      %p219 = scmp.eq.s32.totalorder %s22, 0
      %p220 = por %p218, %p219
      %p221 = scmp.ne.s32.totalorder %s210, %s213
      %p222 = scmp.eq.s32.totalorder %s27, 1
      %p223 = por %p221, %p222
      %p224 = scmp.ne.s32.totalorder %s213, %s214
      %p225 = scmp.eq.s32.totalorder %s27, 0
      %p226 = por %p224, %p225
      %p227 = scmp.ne.s32.totalorder %s213, %s214
      %p228 = scmp.eq.s32.totalorder %s28, 1
      %p229 = por %p227, %p228
      %p231 = scmp.ne.s32.totalorder %s214, %s230
      %p232 = scmp.eq.s32.totalorder %s28, 0
      %p233 = por %p231, %p232
      %s234 = ssub.s32 %s22, %s29
      %p235 = scmp.eq.s32.totalorder %s234, 0
      %s237 = sadd.s32 %s236, 1
      %s238 = scalar_select %p235, %s236, %s237
      %p241 = pneg %p235
      %p242 = scmp.eq.s32.totalorder %s22, 1
      %p243 = por %p241, %p242
      %p244 = scmp.ne.s32.totalorder %s236, %s239
      %p245 = scmp.eq.s32.totalorder %s22, 0
      %p246 = por %p244, %p245
      %p247 = scmp.ne.s32.totalorder %s236, %s239
      %p248 = scmp.eq.s32.totalorder %s27, 1
      %p249 = por %p247, %p248
      %p250 = scmp.ne.s32.totalorder %s239, %s240
      %p251 = scmp.eq.s32.totalorder %s27, 0
      %p252 = por %p250, %p251
      %p253 = scmp.ne.s32.totalorder %s239, %s240
      %p254 = scmp.eq.s32.totalorder %s28, 1
      %p255 = por %p253, %p254
      %p257 = scmp.ne.s32.totalorder %s240, %s256
      %p258 = scmp.eq.s32.totalorder %s28, 0
      %p259 = por %p257, %p258
      %p260 = scmp.le.s32.totalorder 1, %s22
      %p261 = scmp.lt.s32.totalorder %s22, 3
      %p262 = pnand %p260, %p261
      %p263 = pneg %p262
      // Predicated region
      $region9: #{tpu_custom_call.1} parent=5 // pred_check
        _
      $region10: #{tpu_custom_call.1} parent=5 // pred_check_branch
        %265 = sbr.rel (%p262) target = $region12
      $region11: #{tpu_custom_call.1} parent=5 // pred_region
        %s266 = ssub.s32 %s22, 1
        // Predicated region
        $region13: #{tpu_custom_call.1} parent=11 // pred_check
          %p267 = pneg %p95
        $region14: #{tpu_custom_call.1} parent=11 // pred_check_branch
          %269 = sbr.rel (%p267) target = $region16
        $region15: #{tpu_custom_call.1} parent=11 // pred_region
          _
        $region16: #{tpu_custom_call.1} parent=11 // pred_fallthru
          _
        // Predicated region
        $region17: #{tpu_custom_call.1} parent=11 // pred_check
          %p270 = pneg %p116
        $region18: #{tpu_custom_call.1} parent=11 // pred_check_branch
          %272 = sbr.rel (%p270) target = $region20
        $region19: #{tpu_custom_call.1} parent=11 // pred_region
          _
        $region20: #{tpu_custom_call.1} parent=11 // pred_fallthru
          _
        // Predicated region
        $region21: #{tpu_custom_call.1} parent=11 // pred_check
          %p273 = pneg %p137
        $region22: #{tpu_custom_call.1} parent=11 // pred_check_branch
          %275 = sbr.rel (%p273) target = $region24
        $region23: #{tpu_custom_call.1} parent=11 // pred_region
          _
        $region24: #{tpu_custom_call.1} parent=11 // pred_fallthru
          _
        // Predicated region
        $region25: #{tpu_custom_call.1} parent=11 // pred_check
          %p276 = pneg %p158
        $region26: #{tpu_custom_call.1} parent=11 // pred_check_branch
          %278 = sbr.rel (%p276) target = $region28
        $region27: #{tpu_custom_call.1} parent=11 // pred_region
          _
        $region28: #{tpu_custom_call.1} parent=11 // pred_fallthru
          _
        // Predicated region
        $region29: #{tpu_custom_call.1} parent=11 // pred_check
          %p279 = pneg %p179
        $region30: #{tpu_custom_call.1} parent=11 // pred_check_branch
          %281 = sbr.rel (%p279) target = $region32
        $region31: #{tpu_custom_call.1} parent=11 // pred_region
          _
        $region32: #{tpu_custom_call.1} parent=11 // pred_fallthru
          _
        // Predicated region
        $region33: #{tpu_custom_call.1} parent=11 // pred_check
          %p282 = pneg %p200
        $region34: #{tpu_custom_call.1} parent=11 // pred_check_branch
          %284 = sbr.rel (%p282) target = $region36
        $region35: #{tpu_custom_call.1} parent=11 // pred_region
          _
        $region36: #{tpu_custom_call.1} parent=11 // pred_fallthru
          _
      $region12: #{tpu_custom_call.1} parent=5 // pred_fallthru
        _
      %p285 = scmp.lt.s32.totalorder %s22, 2
      // Predicated region
      $region37: #{tpu_custom_call.1} parent=5 // pred_check
        %p286 = pneg %p285
      $region38: #{tpu_custom_call.1} parent=5 // pred_check_branch
        %288 = sbr.rel (%p286) target = $region40
      $region39: #{tpu_custom_call.1} parent=5 // pred_region
        // Predicated region
        $region41: #{tpu_custom_call.1} parent=39 // pred_check
          %p289 = pneg %p42
        $region42: #{tpu_custom_call.1} parent=39 // pred_check_branch
          %291 = sbr.rel (%p289) target = $region44
        $region43: #{tpu_custom_call.1} parent=39 // pred_region
          %p292 = scmp.lt.s32.totalorder %s22, 1
          %s293 = scalar_select %p292, %s22, 1
          %s294 = smul.addr %s293, 8
          %s295 = scalar_lea.vmem %s0, %s294
        $region44: #{tpu_custom_call.1} parent=39 // pred_fallthru
          _
        // Predicated region
        $region45: #{tpu_custom_call.1} parent=39 // pred_check
          %p296 = pneg %p68
        $region46: #{tpu_custom_call.1} parent=39 // pred_check_branch
          %298 = sbr.rel (%p296) target = $region48
        $region47: #{tpu_custom_call.1} parent=39 // pred_region
          %p299 = scmp.lt.s32.totalorder %s22, 1
          %s300 = scalar_select %p299, %s22, 1
          %s301 = scalar_lea.vmem %s1, %s300
        $region48: #{tpu_custom_call.1} parent=39 // pred_fallthru
          _
      $region40: #{tpu_custom_call.1} parent=5 // pred_fallthru
        _
      %p302 = scmp.le.s32.totalorder 1, %s22
      %p303 = scmp.lt.s32.totalorder %s22, 3
      %p304 = pnand %p302, %p303
      %p305 = pneg %p304
      // Predicated region
      $region49: #{tpu_custom_call.1} parent=5 // pred_check
        _
      $region50: #{tpu_custom_call.1} parent=5 // pred_check_branch
        %307 = sbr.rel (%p304) target = $region52
      $region51: #{tpu_custom_call.1} parent=5 // pred_region
        %s308 = ssub.s32 %s22, 1
        %p309 = scmp.lt.s32.totalorder %s27, 1
        %s310 = scalar_select %p309, %s27, 1
        %s311 = smul.addr %s310, 8
        %s312 = scalar_lea.vmem %s0, %s311
        %p313 = pneg %p48
        %p314 = pneg %p45
        %p315 = scmp.lt.s32.totalorder %s27, 1
        %s316 = scalar_select %p315, %s27, 1
        %s317 = scalar_lea.vmem %s1, %s316
        %p318 = pneg %p74
        %p319 = pneg %p71
        %p320 = pneg %p95
        %p321 = pneg %p92
        %p322 = pneg %p116
        %p323 = pneg %p113
        %p324 = pneg %p137
        %p325 = pneg %p134
        %p326 = pneg %p158
        %p327 = pneg %p155
        %p328 = pneg %p179
        %p329 = pneg %p176
        %p330 = pneg %p200
        %p331 = pneg %p197
        %p332 = pneg %p226
        %p333 = pneg %p223
        %s334 = sand.u32 %s213, 1
        %s335 = scalar_lea.sflag [#allocation3], %s334
        %s336 = sand.u32 %s213, 1
        %s337 = smul.addr %s336, 8
        %s338 = scalar_lea.vmem [#allocation2], %s337
        %p339 = pneg %p252
        %p340 = pneg %p249
        %s341 = sand.u32 %s239, 1
        %s342 = scalar_lea.sflag [#allocation5], %s341
        %s343 = sand.u32 %s239, 1
        %s344 = scalar_lea.vmem [#allocation4], %s343
        %p345 = scmp.lt.s32.totalorder %s27, 1
        %s346 = scalar_select %p345, %s27, 1
        %s347 = smul.addr %s346, 8
        %s348 = scalar_lea.vmem %s0, %s347
        %p349 = scmp.lt.s32.totalorder %s27, 1
        %s350 = scalar_select %p349, %s27, 1
        %s351 = scalar_lea.vmem %s1, %s350
        %v352 = vld [vmem:[%s348] sm:$0xff]
        %v353 = vld [vmem:[%s2] sm:$0xff]
        %v354 = vld [vmem:[%s2 + $0x8] sm:$0xff]
        %v355 = vld [vmem:[%s2 + $0x10] sm:$0xff]
        %v356 = vld [vmem:[%s2 + $0x18] sm:$0xff]
        %v357 = vld [vmem:[%s2 + $0x20] sm:$0xff]
        %v358 = vld [vmem:[%s2 + $0x28] sm:$0xff]
        %v359 = vld [vmem:[%s2 + $0x30] sm:$0xff]
        %v360 = vld [vmem:[%s2 + $0x38] sm:$0xff]
        %v361 = vld [vmem:[%s3] sm:$0xff]
        %v362 = vld [vmem:[%s3 + $0x8] sm:$0xff]
        %v363 = vld [vmem:[%s3 + $0x10] sm:$0xff]
        %v364 = vld [vmem:[%s3 + $0x18] sm:$0xff]
        %v365 = vld [vmem:[%s3 + $0x20] sm:$0xff]
        %v366 = vld [vmem:[%s3 + $0x28] sm:$0xff]
        %v367 = vld [vmem:[%s3 + $0x30] sm:$0xff]
        %v368 = vld [vmem:[%s3 + $0x38] sm:$0xff]
        %370 = vset.pattern.permute.xlu0 0
        %371 = vperm.xlu0 %370, %v361
        %v372 = vpop.permute.xlu0 %371
        %375 = vset.pattern.permute.xlu0 0
        %376 = vperm.xlu0 %375, %v362
        %v377 = vpop.permute.xlu0 %376
        %380 = vset.pattern.permute.xlu0 0
        %381 = vperm.xlu0 %380, %v363
        %v382 = vpop.permute.xlu0 %381
        %385 = vset.pattern.permute.xlu0 0
        %386 = vperm.xlu0 %385, %v364
        %v387 = vpop.permute.xlu0 %386
        %390 = vset.pattern.permute.xlu0 0
        %391 = vperm.xlu0 %390, %v365
        %v392 = vpop.permute.xlu0 %391
        %395 = vset.pattern.permute.xlu0 0
        %396 = vperm.xlu0 %395, %v366
        %v397 = vpop.permute.xlu0 %396
        %400 = vset.pattern.permute.xlu0 0
        %401 = vperm.xlu0 %400, %v367
        %v402 = vpop.permute.xlu0 %401
        %405 = vset.pattern.permute.xlu0 0
        %406 = vperm.xlu0 %405, %v368
        %v407 = vpop.permute.xlu0 %406
        %vm409 = vcmask 64512
        %v411 = vsel %vm409, %v353, 0
        %v414 = vsel %vm409, %v354, 0
        %v417 = vsel %vm409, %v355, 0
        %v420 = vsel %vm409, %v356, 0
        %v423 = vsel %vm409, %v357, 0
        %v426 = vsel %vm409, %v358, 0
        %v429 = vsel %vm409, %v359, 0
        %v432 = vsel %vm409, %v360, 0
        %434 = vmatpush.msra.mxu0 0.0
        %435 = vmatpush.msra.mxu0 0.0
        %436 = vmatpush.msra.mxu0 0.0
        %437 = vmatpush.msra.mxu0 0.0
        %438 = vmatpush.msra.mxu0 0.0
        %439 = vmatpush.msra.mxu0 0.0
        %440 = vmatpush.msra.mxu0 0.0
        %441 = vmatpush.msra.mxu0 0.0
        %442 = vmatpush.msra.mxu0 0.0
        %443 = vmatpush.msra.mxu0 0.0
        %444 = vmatpush.msra.mxu0 0.0
        %445 = vmatpush.msra.mxu0 0.0
        %446 = vmatpush.msra.mxu0 0.0
        %447 = vmatpush.msra.mxu0 0.0
        %448 = vmatpush.msra.mxu0 0.0
        %449 = vmatpush.msra.mxu0 %v352
        %450 = vmatmul.f32.gmra.mxu0 %v411
        %v451 = vpop.f32.mrf.mxu0
        %v452 = vadd.f32 %v372, %v451
        %453 = vmatmul.f32.gmra.mxu0 %v414
        %v454 = vpop.f32.mrf.mxu0
        %v455 = vadd.f32 %v377, %v454
        %456 = vmatmul.f32.gmra.mxu0 %v417
        %v457 = vpop.f32.mrf.mxu0
        %v458 = vadd.f32 %v382, %v457
        %459 = vmatmul.f32.gmra.mxu0 %v420
        %v460 = vpop.f32.mrf.mxu0
        %v461 = vadd.f32 %v387, %v460
        %462 = vmatmul.f32.gmra.mxu0 %v423
        %v463 = vpop.f32.mrf.mxu0
        %v464 = vadd.f32 %v392, %v463
        %465 = vmatmul.f32.gmra.mxu0 %v426
        %v466 = vpop.f32.mrf.mxu0
        %v467 = vadd.f32 %v397, %v466
        %468 = vmatmul.f32.gmra.mxu0 %v429
        %v469 = vpop.f32.mrf.mxu0
        %v470 = vadd.f32 %v402, %v469
        %471 = vmatmul.f32.gmra.mxu0 %v432
        %v472 = vpop.f32.mrf.mxu0
        %v473 = vadd.f32 %v407, %v472
        %474 = vdwg.mxu0
        %v475 = vtanh.pop %v452
        %v476 = vtanh.pop %v455
        %v477 = vtanh.pop %v458
        %v478 = vtanh.pop %v461
        %v479 = vmax.f32 %v464, 0.0
        %v480 = vmax.f32 %v467, 0.0
        %v481 = vmax.f32 %v470, 0.0
        %v482 = vmax.f32 %v473, 0.0
        %v483 = vld [vmem:[%s4] sm:$0xff]
        %v484 = vld [vmem:[%s4 + $0x8] sm:$0xff]
        %v485 = vld [vmem:[%s4 + $0x10] sm:$0xff]
        %v486 = vld [vmem:[%s4 + $0x18] sm:$0xff]
        %v487 = vld [vmem:[%s4 + $0x20] sm:$0xff]
        %v488 = vld [vmem:[%s4 + $0x28] sm:$0xff]
        %v489 = vld [vmem:[%s4 + $0x30] sm:$0xff]
        %v490 = vld [vmem:[%s4 + $0x38] sm:$0xff]
        %v491 = vld [vmem:[%s5] sm:$0xff]
        %v492 = vld [vmem:[%s5 + $0x8] sm:$0xff]
        %v493 = vld [vmem:[%s5 + $0x10] sm:$0xff]
        %v494 = vld [vmem:[%s5 + $0x18] sm:$0xff]
        %v495 = vld [vmem:[%s5 + $0x20] sm:$0xff]
        %v496 = vld [vmem:[%s5 + $0x28] sm:$0xff]
        %v497 = vld [vmem:[%s5 + $0x30] sm:$0xff]
        %v498 = vld [vmem:[%s5 + $0x38] sm:$0xff]
        %500 = vset.pattern.permute.xlu0 0
        %501 = vperm.xlu0 %500, %v491
        %v502 = vpop.permute.xlu0 %501
        %505 = vset.pattern.permute.xlu0 0
        %506 = vperm.xlu0 %505, %v492
        %v507 = vpop.permute.xlu0 %506
        %510 = vset.pattern.permute.xlu0 0
        %511 = vperm.xlu0 %510, %v493
        %v512 = vpop.permute.xlu0 %511
        %515 = vset.pattern.permute.xlu0 0
        %516 = vperm.xlu0 %515, %v494
        %v517 = vpop.permute.xlu0 %516
        %520 = vset.pattern.permute.xlu0 0
        %521 = vperm.xlu0 %520, %v495
        %v522 = vpop.permute.xlu0 %521
        %525 = vset.pattern.permute.xlu0 0
        %526 = vperm.xlu0 %525, %v496
        %v527 = vpop.permute.xlu0 %526
        %530 = vset.pattern.permute.xlu0 0
        %531 = vperm.xlu0 %530, %v497
        %v532 = vpop.permute.xlu0 %531
        %535 = vset.pattern.permute.xlu0 0
        %536 = vperm.xlu0 %535, %v498
        %v537 = vpop.permute.xlu0 %536
        %vm539 = vcmask 523264
        %v541 = vsel %vm539, %v483, 0
        %v544 = vsel %vm539, %v484, 0
        %v547 = vsel %vm539, %v485, 0
        %v550 = vsel %vm539, %v486, 0
        %v553 = vsel %vm539, %v487, 0
        %v556 = vsel %vm539, %v488, 0
        %v559 = vsel %vm539, %v489, 0
        %v562 = vsel %vm539, %v490, 0
        %564 = vmatpush.msra.mxu0 0.0
        %565 = vmatpush.msra.mxu0 0.0
        %566 = vmatpush.msra.mxu0 0.0
        %567 = vmatpush.msra.mxu0 0.0
        %568 = vmatpush.msra.mxu0 0.0
        %569 = vmatpush.msra.mxu0 0.0
        %570 = vmatpush.msra.mxu0 0.0
        %571 = vmatpush.msra.mxu0 0.0
        %572 = vmatpush.msra.mxu0 %v482
        %573 = vmatpush.msra.mxu0 %v481
        %574 = vmatpush.msra.mxu0 %v480
        %575 = vmatpush.msra.mxu0 %v479
        %576 = vmatpush.msra.mxu0 %v478
        %577 = vmatpush.msra.mxu0 %v477
        %578 = vmatpush.msra.mxu0 %v476
        %579 = vmatpush.msra.mxu0 %v475
        %580 = vmatmul.f32.gmra.mxu0 %v541
        %v581 = vpop.f32.mrf.mxu0
        %v582 = vadd.f32 %v502, %v581
        %583 = vmatmul.f32.gmra.mxu0 %v544
        %v584 = vpop.f32.mrf.mxu0
        %v585 = vadd.f32 %v507, %v584
        %586 = vmatmul.f32.gmra.mxu0 %v547
        %v587 = vpop.f32.mrf.mxu0
        %v588 = vadd.f32 %v512, %v587
        %589 = vmatmul.f32.gmra.mxu0 %v550
        %v590 = vpop.f32.mrf.mxu0
        %v591 = vadd.f32 %v517, %v590
        %592 = vmatmul.f32.gmra.mxu0 %v553
        %v593 = vpop.f32.mrf.mxu0
        %v594 = vadd.f32 %v522, %v593
        %595 = vmatmul.f32.gmra.mxu0 %v556
        %v596 = vpop.f32.mrf.mxu0
        %v597 = vadd.f32 %v527, %v596
        %598 = vmatmul.f32.gmra.mxu0 %v559
        %v599 = vpop.f32.mrf.mxu0
        %v600 = vadd.f32 %v532, %v599
        %601 = vmatmul.f32.gmra.mxu0 %v562
        %v602 = vpop.f32.mrf.mxu0
        %v603 = vadd.f32 %v537, %v602
        %604 = vdwg.mxu0
        %v605 = vtanh.pop %v582
        %v606 = vtanh.pop %v585
        %v607 = vtanh.pop %v588
        %v608 = vtanh.pop %v591
        %v609 = vmax.f32 %v594, 0.0
        %v610 = vmax.f32 %v597, 0.0
        %v611 = vmax.f32 %v600, 0.0
        %v612 = vmax.f32 %v603, 0.0
        %v613 = vld [vmem:[%s6] sm:$0xff]
        %v614 = vld [vmem:[%s6 + $0x8] sm:$0xff]
        %v615 = vld [vmem:[%s7] sm:$0xff]
        %v616 = vld [vmem:[%s7 + $0x8] sm:$0xff]
        %618 = vset.pattern.permute.xlu0 0
        %619 = vperm.xlu0 %618, %v615
        %v620 = vpop.permute.xlu0 %619
        %623 = vset.pattern.permute.xlu0 0
        %624 = vperm.xlu0 %623, %v616
        %v625 = vpop.permute.xlu0 %624
        %v628 = vsel %vm539, %v613, 0
        %v631 = vsel %vm539, %v614, 0
        %633 = vmatpush.msra.mxu0 0.0
        %634 = vmatpush.msra.mxu0 0.0
        %635 = vmatpush.msra.mxu0 0.0
        %636 = vmatpush.msra.mxu0 0.0
        %637 = vmatpush.msra.mxu0 0.0
        %638 = vmatpush.msra.mxu0 0.0
        %639 = vmatpush.msra.mxu0 0.0
        %640 = vmatpush.msra.mxu0 0.0
        %641 = vmatpush.msra.mxu0 %v612
        %642 = vmatpush.msra.mxu0 %v611
        %643 = vmatpush.msra.mxu0 %v610
        %644 = vmatpush.msra.mxu0 %v609
        %645 = vmatpush.msra.mxu0 %v608
        %646 = vmatpush.msra.mxu0 %v607
        %647 = vmatpush.msra.mxu0 %v606
        %648 = vmatpush.msra.mxu0 %v605
        %649 = vmatmul.f32.gmra.mxu0 %v628
        %v650 = vpop.f32.mrf.mxu0
        %v651 = vadd.f32 %v620, %v650
        %652 = vmatmul.f32.gmra.mxu0 %v631
        %v653 = vpop.f32.mrf.mxu0
        %v654 = vadd.f32 %v625, %v653
        %655 = vdwg.mxu0
        %v656 = vmul.f32 %v651, 1.442695
        %v657 = vpow.pop %v656
        %v658 = vmul.f32 %v352, %v657
        %v659 = vadd.f32 %v658, %v654
        %660 = vst [vmem:[%s338] sm:$0xff] %v659
        %v661 = vld [vmem:[%s351] sm:$0x1]
        %v662 = vrot.slane %v651, 4
        %v663 = vadd.f32 %v651, %v662
        %v664 = vrot.slane %v663, 2
        %v665 = vadd.f32 %v663, %v664
        %v666 = vrot.slane %v665, 1
        %v667 = vadd.f32 %v665, %v666
        %v668 = vsub.f32 %v661, %v667
        %669 = vst [vmem:[%s344] sm:$0x1] %v668
        %s670 = sand.u32 %s213, 1
        %s671 = scalar_lea.sflag [#allocation3], %s670
        %s672 = sand.u32 %s213, 1
        %s673 = smul.addr %s672, 8
        %s674 = scalar_lea.vmem [#allocation2], %s673
        %s675 = sand.u32 %s239, 1
        %s676 = scalar_lea.sflag [#allocation5], %s675
        %s677 = sand.u32 %s239, 1
        %s678 = scalar_lea.vmem [#allocation4], %s677
        // Predicated region
        $region53: #{tpu_custom_call.1} parent=51 // pred_check
          %p679 = pneg %p223
        $region54: #{tpu_custom_call.1} parent=51 // pred_check_branch
          %681 = sbr.rel (%p679) target = $region56
        $region55: #{tpu_custom_call.1} parent=51 // pred_region
          %683 = vsyncadd %s671, 0
          %s684 = smul.addr %s27, 8
          %s685 = scalar_lea.hbm %s8, %s684
          %s687 = sshll.u32 %s674, 4
          %s688 = int_to_ptr.vmem [resolvable:$true] %s687
          %s689 = sshll.u32 %s685, 4
          %s690 = int_to_ptr.hbm [resolvable:$true] %s689
          %692 = dma.vmem_to_hbm [thread:$0]  %s688, 128, %s690, %s671
        $region56: #{tpu_custom_call.1} parent=51 // pred_fallthru
          _
        // Predicated region
        $region57: #{tpu_custom_call.1} parent=51 // pred_check
          %p693 = pneg %p249
        $region58: #{tpu_custom_call.1} parent=51 // pred_check_branch
          %695 = sbr.rel (%p693) target = $region60
        $region59: #{tpu_custom_call.1} parent=51 // pred_region
          %697 = vsyncadd %s676, 0
          %s698 = scalar_lea.hbm %s9, %s27
          %s700 = sshll.u32 %s678, 4
          %s701 = int_to_ptr.vmem [resolvable:$true] %s700
          %s702 = sshll.u32 %s698, 4
          %s703 = int_to_ptr.hbm [resolvable:$true] %s702
          %705 = dma.vmem_to_hbm [thread:$0]  %s701, 16, %s703, %s676
        $region60: #{tpu_custom_call.1} parent=51 // pred_fallthru
          _
      $region52: #{tpu_custom_call.1} parent=5 // pred_fallthru
        _
      %p706 = scmp.le.s32.totalorder 2, %s22
      // Predicated region
      $region61: #{tpu_custom_call.1} parent=5 // pred_check
        %p707 = pneg %p706
      $region62: #{tpu_custom_call.1} parent=5 // pred_check_branch
        %709 = sbr.rel (%p707) target = $region64
      $region63: #{tpu_custom_call.1} parent=5 // pred_region
        %s710 = ssub.s32 %s22, 2
        // Predicated region
        $region65: #{tpu_custom_call.1} parent=63 // pred_check
          %p711 = pneg %p229
        $region66: #{tpu_custom_call.1} parent=63 // pred_check_branch
          %713 = sbr.rel (%p711) target = $region68
        $region67: #{tpu_custom_call.1} parent=63 // pred_region
          %s714 = sand.u32 %s214, 1
          %s715 = scalar_lea.sflag [#allocation3], %s714
          %s716 = sand.u32 %s214, 1
          %s717 = smul.addr %s716, 8
          %s718 = scalar_lea.vmem [#allocation2], %s717
          %720 = dma.done %s715, 128
        $region68: #{tpu_custom_call.1} parent=63 // pred_fallthru
          _
        // Predicated region
        $region69: #{tpu_custom_call.1} parent=63 // pred_check
          %p721 = pneg %p255
        $region70: #{tpu_custom_call.1} parent=63 // pred_check_branch
          %723 = sbr.rel (%p721) target = $region72
        $region71: #{tpu_custom_call.1} parent=63 // pred_region
          %s724 = sand.u32 %s240, 1
          %s725 = scalar_lea.sflag [#allocation5], %s724
          %s726 = sand.u32 %s240, 1
          %s727 = scalar_lea.vmem [#allocation4], %s726
          %729 = dma.done %s725, 16
        $region72: #{tpu_custom_call.1} parent=63 // pred_fallthru
          _
      $region64: #{tpu_custom_call.1} parent=5 // pred_fallthru
        _
    $region6: #{tpu_custom_call.1} parent=1 // loop_footer
      %s26 = sadd.s32 1, %s22
    $region7: #{tpu_custom_call.1} parent=1 // loop_footer_branch
      %21 = sbr.rel target = $region3
    $region8: #{tpu_custom_call.1} parent=1 // loop_exit
      _
    %730 = vsyncpa [#allocation3], 1
    %s731 = scalar_lea.sflag [#allocation3], 1
    %732 = vsyncpa %s731, 1
    %733 = vsyncpa [#allocation5], 1
    %s734 = scalar_lea.sflag [#allocation5], 1
    %735 = vsyncpa %s734, 1

</llo_original>
